<compile_context>
chip_gen: v7x
topology: tpu7x:2x2x1
jax: 0.10.0
libtpu: 0.0.40
codegen_flags: <defaults>
</compile_context>

<pallas_src>
import functools

import jax
import jax.numpy as jnp
from jax.experimental import pallas as pl
from jax.experimental.pallas import tpu as pltpu


def _gtc_kernel(x_ref, m_ref, o_ref, col_ref, *, t, pad_l, cv, k_len):
    # x_ref:   (1, T, C_in*V)        VMEM, bf16  -- this batch's x, time-major rows
    # m_ref:   (K*C_in*V, C_out*V)   VMEM, bf16  -- fused (conv x graph) weight, resident
    # o_ref:   (1, T, C_out*V)       VMEM, f32   -- lane-dense output tile
    # col_ref: (T, K*C_in*V)         VMEM, bf16  -- im2col slab for this batch

    # Build the im2col slab with static per-tap slices.  Only the 'same'-padding
    # halo rows are zero-filled; the interior is a direct (shifted) copy of x.
    for k in range(k_len):
        shift = k - pad_l                       # input-time offset of tap k
        t0 = max(0, -shift)                     # first valid output row
        t1 = min(t, t - shift)                  # one past last valid output row
        s0, s1 = t0 + shift, t1 + shift         # matching input rows
        c0 = k * cv
        if t0 > 0:                              # left halo -> zeros
            col_ref[0:t0, c0:c0 + cv] = jnp.zeros((t0, cv), col_ref.dtype)
        if t1 < t:                              # right halo -> zeros
            col_ref[t1:t, c0:c0 + cv] = jnp.zeros((t - t1, cv), col_ref.dtype)
        col_ref[t0:t1, c0:c0 + cv] = x_ref[0, s0:s1, :]

    # One deep MXU matmul: (T, K*CV) @ (K*CV, OV), f32 accumulation.
    out = jnp.dot(col_ref[...], m_ref[...], preferred_element_type=jnp.float32)
    o_ref[0] = out.astype(o_ref.dtype)


def graph_temporal_convolution(x, adjacency, importance, conv_weight):
    B, C_in, V, T = x.shape
    C_out, _, _, K = conv_weight.shape          # (C_out, C_in, 1, K)
    pad_l = (K - 1) // 2                        # PyTorch padding='same' split
    CV, OV = C_in * V, C_out * V

    # Fused weight (built once in f32, cast to bf16 for the MXU):
    #   M[k*CV + c*V + u, o*V + v] = W[o,c,k] * adjacency[v,u] * importance[c,v,u]
    a_imp = (adjacency[None, :, :] * importance).astype(jnp.float32)   # (C_in, V, V)
    w = conv_weight[:, :, 0, :].astype(jnp.float32)                    # (C_out, C_in, K)
    m_fused = jnp.einsum('ock,cvu->kcuov', w, a_imp).reshape(K * CV, OV)
    m_bf16 = m_fused.astype(jnp.bfloat16)
    # TODO(synk): at ST-GCN-like sizes (V~25, C~64-256) the fused M is
    # O(K*Cin*Cout*V^2) bytes and ~V x redundant in MXU FLOPs; beyond a few MiB
    # switch to two chained matmuls (graph-mix, then K-tap temporal conv).

    # Layout plumbing: rows = time, contraction = (c,u), output lanes = (o,v)=128.
    x_t = jnp.transpose(x, (0, 3, 1, 2)).reshape(B, T, CV).astype(jnp.bfloat16)
    # TODO(synk): at production sizes fold this transpose into the kernel
    # (pltpu.einshape on the VMEM tile) to avoid the extra HBM round trip.

    kernel = functools.partial(_gtc_kernel, t=T, pad_l=pad_l, cv=CV, k_len=K)

    out_btv = pl.pallas_call(
        kernel,
        out_shape=jax.ShapeDtypeStruct((B, T, OV), x.dtype),
        grid=(B,),
        in_specs=[
            pl.BlockSpec((1, T, CV), lambda b: (b, 0, 0)),       # per-batch x tile
            pl.BlockSpec((K * CV, OV), lambda b: (0, 0)),        # resident fused weight
        ],
        out_specs=pl.BlockSpec((1, T, OV), lambda b: (b, 0, 0)),
        scratch_shapes=[pltpu.VMEM((T, K * CV), jnp.bfloat16)],  # im2col slab
        compiler_params=pltpu.CompilerParams(
            dimension_semantics=("parallel",),                   # 2 TCs on v7x
            vmem_limit_bytes=64 * 1024 * 1024),
    )(x_t, m_bf16)
    # TODO(synk): for production T, add a T-tiled grid axis with a K-1 halo in
    # the index_map (tiles sized so 2*x_tile + 2*out_tile + M fits v7x VMEM).

    # Back to the module's NCHW (B, C_out, V, T) layout.
    out = out_btv.reshape(B, T, C_out, V).transpose(0, 2, 3, 1)
    return out, importance


def _reference(x, adjacency, importance, conv_weight):
    a_imp = adjacency[None, :, :] * importance
    mixed = jnp.einsum('cvu,bcut->bcvt', a_imp, x)
    K = conv_weight.shape[-1]
    pad_l = (K - 1) // 2
    return jax.lax.conv_general_dilated(
        mixed, conv_weight,
        window_strides=(1, 1),
        padding=((0, 0), (pad_l, (K - 1) - pad_l)),
        dimension_numbers=('NCHW', 'OIHW', 'NCHW'))


if __name__ == "__main__":
    key = jax.random.PRNGKey(0)
    k1, k2, k3, k4 = jax.random.split(key, 4)

    B, C_in, C_out, V, T, K = 2, 4, 8, 16, 16, 3

    # Deterministic synthetic parameters (shapes follow the module's __init__).
    adjacency = (jax.random.uniform(k1, (V, V)) > 0.5).astype(jnp.float32)
    importance = jax.random.normal(k2, (C_in, V, V), dtype=jnp.float32)
    conv_weight = 0.1 * jax.random.normal(k3, (C_out, C_in, 1, K), dtype=jnp.float32)
    x = jax.random.normal(k4, (B, C_in, V, T), dtype=jnp.float32)

    out, imp = graph_temporal_convolution(x, adjacency, importance, conv_weight)
    out = jax.block_until_ready(out)

    ref = _reference(x, adjacency, importance, conv_weight)
    assert out.shape == (B, C_out, V, T)
    # bf16 operands (f32 accumulation) -> tolerance relaxed vs the f32 reference.
    assert jnp.allclose(out, ref, atol=5e-2, rtol=5e-2), "mismatch vs reference"
    assert jnp.array_equal(imp, importance)
    print("KERNEL_OK")
</pallas_src>

<mosaic_0001>
module attributes {stable_mosaic.version = 11 : i64} {
  func.func @_gtc_kernel(%arg0: i32, %arg1: memref<1x16x64xbf16, #tpu.memory_space<vmem>>, %arg2: memref<192x128xbf16, #tpu.memory_space<vmem>>, %arg3: memref<1x16x128xf32, #tpu.memory_space<vmem>>, %arg4: memref<16x192xbf16, #tpu.memory_space<vmem>>) attributes {dimension_semantics = [#tpu.dimension_semantics<parallel>], iteration_bounds = array<i64: 2>, scalar_prefetch = 0 : i64, scratch_operands = 1 : i64, tpu.core_type = #tpu.core_type<tc>, window_params = [{transform_indices = @transform_0, window_bounds = array<i64: 1, 16, 64>}, {pipeline_mode = #tpu.pipeline_mode<synchronous>, transform_indices = @transform_1, window_bounds = array<i64: 192, 128>}, {transform_indices = @transform_2, window_bounds = array<i64: 1, 16, 128>}]} {
    %cst = arith.constant 0.000000e+00 : bf16
    %0 = vector.broadcast %cst : bf16 to vector<1x64xbf16>
    %c0 = arith.constant 0 : index
    %c0_0 = arith.constant 0 : index
    %1 = vector.load %arg4[%c0, %c0_0] : memref<16x192xbf16, #tpu.memory_space<vmem>>, vector<1x64xbf16>
    tpu.vector_store %arg4[%c0, %c0_0], %0 {strides = array<i32>} : memref<16x192xbf16, #tpu.memory_space<vmem>>, vector<1x64xbf16>,
    %c0_1 = arith.constant 0 : index
    %c0_2 = arith.constant 0 : index
    %c0_3 = arith.constant 0 : index
    %2 = vector.load %arg1[%c0_1, %c0_2, %c0_3] : memref<1x16x64xbf16, #tpu.memory_space<vmem>>, vector<1x15x64xbf16>
    %3 = vector.shape_cast %2 : vector<1x15x64xbf16> to vector<15x64xbf16>
    %c1 = arith.constant 1 : index
    %c0_4 = arith.constant 0 : index
    %4 = vector.load %arg4[%c1, %c0_4] : memref<16x192xbf16, #tpu.memory_space<vmem>>, vector<15x64xbf16>
    tpu.vector_store %arg4[%c1, %c0_4], %3 {strides = array<i32>} : memref<16x192xbf16, #tpu.memory_space<vmem>>, vector<15x64xbf16>,
    %c0_5 = arith.constant 0 : index
    %c0_6 = arith.constant 0 : index
    %c0_7 = arith.constant 0 : index
    %5 = vector.load %arg1[%c0_5, %c0_6, %c0_7] : memref<1x16x64xbf16, #tpu.memory_space<vmem>>, vector<1x16x64xbf16>
    %6 = vector.shape_cast %5 : vector<1x16x64xbf16> to vector<16x64xbf16>
    %c0_8 = arith.constant 0 : index
    %c64 = arith.constant 64 : index
    %7 = vector.load %arg4[%c0_8, %c64] : memref<16x192xbf16, #tpu.memory_space<vmem>>, vector<16x64xbf16>
    tpu.vector_store %arg4[%c0_8, %c64], %6 {strides = array<i32>} : memref<16x192xbf16, #tpu.memory_space<vmem>>, vector<16x64xbf16>,
    %cst_9 = arith.constant 0.000000e+00 : bf16
    %8 = vector.broadcast %cst_9 : bf16 to vector<1x64xbf16>
    %c15 = arith.constant 15 : index
    %c128 = arith.constant 128 : index
    %9 = vector.load %arg4[%c15, %c128] : memref<16x192xbf16, #tpu.memory_space<vmem>>, vector<1x64xbf16>
    tpu.vector_store %arg4[%c15, %c128], %8 {strides = array<i32>} : memref<16x192xbf16, #tpu.memory_space<vmem>>, vector<1x64xbf16>,
    %c0_10 = arith.constant 0 : index
    %c1_11 = arith.constant 1 : index
    %c0_12 = arith.constant 0 : index
    %10 = vector.load %arg1[%c0_10, %c1_11, %c0_12] : memref<1x16x64xbf16, #tpu.memory_space<vmem>>, vector<1x15x64xbf16>
    %11 = vector.shape_cast %10 : vector<1x15x64xbf16> to vector<15x64xbf16>
    %c0_13 = arith.constant 0 : index
    %c128_14 = arith.constant 128 : index
    %12 = vector.load %arg4[%c0_13, %c128_14] : memref<16x192xbf16, #tpu.memory_space<vmem>>, vector<15x64xbf16>
    tpu.vector_store %arg4[%c0_13, %c128_14], %11 {strides = array<i32>} : memref<16x192xbf16, #tpu.memory_space<vmem>>, vector<15x64xbf16>,
    %c0_15 = arith.constant 0 : index
    %c0_16 = arith.constant 0 : index
    %13 = vector.load %arg4[%c0_15, %c0_16] : memref<16x192xbf16, #tpu.memory_space<vmem>>, vector<16x192xbf16>
    %c0_17 = arith.constant 0 : index
    %c0_18 = arith.constant 0 : index
    %14 = vector.load %arg2[%c0_17, %c0_18] : memref<192x128xbf16, #tpu.memory_space<vmem>>, vector<192x128xbf16>
    %cst_19 = arith.constant dense<0.000000e+00> : vector<16x128xf32>
    %15 = tpu.matmul %13, %14, %cst_19 {dimension_numbers = #tpu.dot_dimension_numbers<[1], [0], [0], [1], [0, 0, 1, 1], [], []>} : vector<16x192xbf16>, vector<192x128xbf16>, vector<16x128xf32> -> vector<16x128xf32>
    %c0_20 = arith.constant 0 : index
    %c0_21 = arith.constant 0 : index
    %c0_22 = arith.constant 0 : index
    %16 = vector.load %arg3[%c0_20, %c0_21, %c0_22] : memref<1x16x128xf32, #tpu.memory_space<vmem>>, vector<1x16x128xf32>
    %17 = vector.shape_cast %16 : vector<1x16x128xf32> to vector<16x128xf32>
    %18 = vector.shape_cast %15 : vector<16x128xf32> to vector<1x16x128xf32>
    tpu.vector_store %arg3[%c0_20, %c0_21, %c0_22], %18 {strides = array<i32>} : memref<1x16x128xf32, #tpu.memory_space<vmem>>, vector<1x16x128xf32>,
    return
  }
  func.func @transform_0(%arg0: i32) -> (i32, i32, i32) {
    %c0_i32 = arith.constant 0 : i32
    %c0_i32_0 = arith.constant 0 : i32
    %c0_i32_1 = arith.constant 0 : i32
    return %arg0, %c0_i32, %c0_i32_0 : i32, i32, i32
  }
  func.func @transform_1(%arg0: i32) -> (i32, i32) {
    %c0_i32 = arith.constant 0 : i32
    %c0_i32_0 = arith.constant 0 : i32
    %c0_i32_1 = arith.constant 0 : i32
    return %c0_i32, %c0_i32_0 : i32, i32
  }
  func.func @transform_2(%arg0: i32) -> (i32, i32, i32) {
    %c0_i32 = arith.constant 0 : i32
    %c0_i32_0 = arith.constant 0 : i32
    %c0_i32_1 = arith.constant 0 : i32
    return %arg0, %c0_i32, %c0_i32_0 : i32, i32, i32
  }
}

</mosaic_0001>

<llo_original>
// kernel: tpu_custom_call.1
$region0: #{tpu_custom_call.1}
  #allocation0 [shape = 'u32[]', space=smem, size = 0x4, offset = 0x4, fixed_abs, tag = 'smem constant byte address 0x4 - core index']
  #allocation1 [shape = 'u32[144,128]{1,0:T(1,128)}', space=vmem, size = 0x12000, scoped, tag = 'internal scratch']
  #allocation2 [shape = 'bf16[16,192]{1,0:T(16,128)(2,1)}', space=vmem, size = 0x2000, scoped, tag = 'scratch operand']
  %s0 = inlined_call_operand.hbm [shape: bf16[2,16,64], index: 0, kind: input, shape index: {}]
  %s1 = inlined_call_operand.hbm [shape: bf16[192,128], index: 1, kind: input, shape index: {}]
  %s2 = inlined_call_operand.hbm [shape: f32[2,16,128], index: 2, kind: output, shape index: {}]
  %s3 = sld [smem:[#allocation0]]
  $region49: #{tpu_custom_call.1} parent=0
    _
  %s5 = ssub.s32 1, %s3
  %s6 = scalar_select 0, %s5, %s3
  $region1: #{tpu_custom_call.1} parent=0
    #allocation3 [shape = 'u8[8192]{0}', space=vmem, size = 0x2000, scoped, tag = 'input window, operand 0']
    #allocation4 [shape = 's32[2]{0}', space=sflag, size = 0x8, scoped, tag = 'scoped memory for tpu_custom_call.1']
    #allocation5 [shape = 's32[2]{0}', space=sflag, size = 0x8, scoped, tag = 'scoped memory for tpu_custom_call.1']
    #allocation6 [shape = 'u8[49152]{0}', space=vmem, size = 0xc000, scoped, tag = 'input window, operand 1, single buffered']
    #allocation7 [shape = 's32[1]{0}', space=sflag, size = 0x4, scoped, tag = 'scoped memory for tpu_custom_call.1']
    #allocation8 [shape = 'u8[16384]{0}', space=vmem, size = 0x4000, scoped, tag = 'output window, operand 0']
    %7 = vsyncpa [#allocation4], 0
    %s8 = scalar_lea.sflag [#allocation4], 1
    %9 = vsyncpa %s8, 0
    %10 = vsyncpa [#allocation7], 0
    %11 = vsyncpa [#allocation5], 0
    %s12 = scalar_lea.sflag [#allocation5], 1
    %13 = vsyncpa %s12, 0
    loop: start=0, step=1, limit=4
    $region2: #{tpu_custom_call.1} parent=1 // loop_pre_header
      _
    $region3: #{tpu_custom_call.1} parent=1 // loop_header
      %s15 = sphi 0, %s19
      %p16 = scmp.ge.s32.totalorder %s15, 4
      %s25 = sphi 0, %s27
      %s28 = sphi 0, %s25
      %s29 = sphi 0, %s28
      %s45 = sphi 0, %s29
      %s49 = sphi 0, %s49
      %s51 = sphi 0, %s49
      %s52 = sphi 0, %s51
      %s66 = sphi 0, %s52
      %s72 = sphi 0, %s74
      %s75 = sphi 0, %s72
      %s76 = sphi 0, %s75
      %s92 = sphi 0, %s76
    $region4: #{tpu_custom_call.1} parent=1 // loop_header_branch
      %18 = sbr.rel (%p16) target = $region8
    $region5: #{tpu_custom_call.1} parent=1 // loop_body
      %s20 = ssub.s32 %s15, 1
      %s21 = ssub.s32 %s15, 2
      %s22 = sadd.s32 %s15, 1
      %s23 = ssub.s32 %s15, %s22
      %p24 = scmp.eq.s32.totalorder %s23, 0
      %s26 = sadd.s32 %s25, 1
      %s27 = scalar_select %p24, %s25, %s26
      %p30 = pneg %p24
      %p31 = scmp.eq.s32.totalorder %s15, 1
      %p32 = por %p30, %p31
      %p33 = scmp.ne.s32.totalorder %s25, %s28
      %p34 = scmp.eq.s32.totalorder %s15, 0
      %p35 = por %p33, %p34
      %p36 = scmp.ne.s32.totalorder %s25, %s28
      %p37 = scmp.eq.s32.totalorder %s20, 1
      %p38 = por %p36, %p37
      %p39 = scmp.ne.s32.totalorder %s28, %s29
      %p40 = scmp.eq.s32.totalorder %s20, 0
      %p41 = por %p39, %p40
      %p42 = scmp.ne.s32.totalorder %s28, %s29
      %p43 = scmp.eq.s32.totalorder %s21, 1
      %p44 = por %p42, %p43
      %p46 = scmp.ne.s32.totalorder %s29, %s45
      %p47 = scmp.eq.s32.totalorder %s21, 0
      %p48 = por %p46, %p47
      %s50 = sadd.s32 %s49, 1
      %p53 = scmp.eq.s32.totalorder %s15, 1
      %p54 = scmp.ne.s32.totalorder %s49, %s51
      %p55 = scmp.eq.s32.totalorder %s15, 0
      %p56 = por %p54, %p55
      %p57 = scmp.ne.s32.totalorder %s49, %s51
      %p58 = scmp.eq.s32.totalorder %s20, 1
      %p59 = por %p57, %p58
      %p60 = scmp.ne.s32.totalorder %s51, %s52
      %p61 = scmp.eq.s32.totalorder %s20, 0
      %p62 = por %p60, %p61
      %p63 = scmp.ne.s32.totalorder %s51, %s52
      %p64 = scmp.eq.s32.totalorder %s21, 1
      %p65 = por %p63, %p64
      %p67 = scmp.ne.s32.totalorder %s52, %s66
      %p68 = scmp.eq.s32.totalorder %s21, 0
      %p69 = por %p67, %p68
      %s70 = ssub.s32 %s15, %s22
      %p71 = scmp.eq.s32.totalorder %s70, 0
      %s73 = sadd.s32 %s72, 1
      %s74 = scalar_select %p71, %s72, %s73
      %p77 = pneg %p71
      %p78 = scmp.eq.s32.totalorder %s15, 1
      %p79 = por %p77, %p78
      %p80 = scmp.ne.s32.totalorder %s72, %s75
      %p81 = scmp.eq.s32.totalorder %s15, 0
      %p82 = por %p80, %p81
      %p83 = scmp.ne.s32.totalorder %s72, %s75
      %p84 = scmp.eq.s32.totalorder %s20, 1
      %p85 = por %p83, %p84
      %p86 = scmp.ne.s32.totalorder %s75, %s76
      %p87 = scmp.eq.s32.totalorder %s20, 0
      %p88 = por %p86, %p87
      %p89 = scmp.ne.s32.totalorder %s75, %s76
      %p90 = scmp.eq.s32.totalorder %s21, 1
      %p91 = por %p89, %p90
      %p93 = scmp.ne.s32.totalorder %s76, %s92
      %p94 = scmp.eq.s32.totalorder %s21, 0
      %p95 = por %p93, %p94
      %p96 = scmp.le.s32.totalorder 1, %s15
      %p97 = scmp.lt.s32.totalorder %s15, 3
      %p98 = pnand %p96, %p97
      %p99 = pneg %p98
      // Predicated region
      $region9: #{tpu_custom_call.1} parent=5 // pred_check
        _
      $region10: #{tpu_custom_call.1} parent=5 // pred_check_branch
        %101 = sbr.rel (%p98) target = $region12
      $region11: #{tpu_custom_call.1} parent=5 // pred_region
        %s102 = ssub.s32 %s15, 1
        // Predicated region
        $region13: #{tpu_custom_call.1} parent=11 // pred_check
          %p103 = pneg %p62
        $region14: #{tpu_custom_call.1} parent=11 // pred_check_branch
          %105 = sbr.rel (%p103) target = $region16
        $region15: #{tpu_custom_call.1} parent=11 // pred_region
          %s107 = ssub.s32 1536, 1536
          %108 = vsyncadd [#allocation7], %s107
          %s109 = sshll.u32 [#allocation6], 4
          %s110 = int_to_ptr.vmem [resolvable:$true] %s109
          %115 = dma.hbm_to_vmem [thread:$0]  %s1, 1536, %s110, [#allocation7], 64, 64, 4
        $region16: #{tpu_custom_call.1} parent=11 // pred_fallthru
          _
      $region12: #{tpu_custom_call.1} parent=5 // pred_fallthru
        _
      %p116 = scmp.lt.s32.totalorder %s15, 2
      // Predicated region
      $region17: #{tpu_custom_call.1} parent=5 // pred_check
        %p117 = pneg %p116
      $region18: #{tpu_custom_call.1} parent=5 // pred_check_branch
        %119 = sbr.rel (%p117) target = $region20
      $region19: #{tpu_custom_call.1} parent=5 // pred_region
        // Predicated region
        $region21: #{tpu_custom_call.1} parent=19 // pred_check
          %p120 = pneg %p35
        $region22: #{tpu_custom_call.1} parent=19 // pred_check_branch
          %122 = sbr.rel (%p120) target = $region24
        $region23: #{tpu_custom_call.1} parent=19 // pred_region
          %s123 = sand.u32 %s25, 1
          %s124 = scalar_lea.sflag [#allocation4], %s123
          %s125 = sand.u32 %s25, 1
          %s126 = smul.addr %s125, 8
          %s127 = scalar_lea.vmem [#allocation3], %s126
          %s129 = ssub.s32 128, 128
          %130 = vsyncadd %s124, %s129
          %s131 = smul.addr %s15, 2
          %s132 = smul.addr %s131, 64
          %s133 = scalar_lea.hbm %s0, %s132
          %s134 = sshll.u32 %s127, 4
          %s135 = int_to_ptr.vmem [resolvable:$true] %s134
          %140 = dma.hbm_to_vmem [thread:$0]  %s133, 128, %s135, %s124, 64, 64, 4
        $region24: #{tpu_custom_call.1} parent=19 // pred_fallthru
          _
      $region20: #{tpu_custom_call.1} parent=5 // pred_fallthru
        _
      %p141 = scmp.le.s32.totalorder 1, %s15
      %p142 = scmp.lt.s32.totalorder %s15, 3
      %p143 = pnand %p141, %p142
      %p144 = pneg %p143
      // Predicated region
      $region25: #{tpu_custom_call.1} parent=5 // pred_check
        _
      $region26: #{tpu_custom_call.1} parent=5 // pred_check_branch
        %146 = sbr.rel (%p143) target = $region28
      $region27: #{tpu_custom_call.1} parent=5 // pred_region
        %s147 = ssub.s32 %s15, 1
        %s148 = sand.u32 %s28, 1
        %s149 = scalar_lea.sflag [#allocation4], %s148
        %s150 = sand.u32 %s28, 1
        %s151 = smul.addr %s150, 8
        %s152 = scalar_lea.vmem [#allocation3], %s151
        // Predicated region
        $region29: #{tpu_custom_call.1} parent=27 // pred_check
          %p153 = pneg %p41
        $region30: #{tpu_custom_call.1} parent=27 // pred_check_branch
          %155 = sbr.rel (%p153) target = $region32
        $region31: #{tpu_custom_call.1} parent=27 // pred_region
          %156 = dma.done %s149, 128
        $region32: #{tpu_custom_call.1} parent=27 // pred_fallthru
          _
        // Predicated region
        $region33: #{tpu_custom_call.1} parent=27 // pred_check
          %p157 = pneg %p62
        $region34: #{tpu_custom_call.1} parent=27 // pred_check_branch
          %159 = sbr.rel (%p157) target = $region36
        $region35: #{tpu_custom_call.1} parent=27 // pred_region
          %160 = dma.done [#allocation7], 1536
        $region36: #{tpu_custom_call.1} parent=27 // pred_fallthru
          _
        %s161 = sand.u32 %s28, 1
        %s162 = scalar_lea.sflag [#allocation4], %s161
        %s163 = sand.u32 %s28, 1
        %s164 = smul.addr %s163, 8
        %s165 = scalar_lea.vmem [#allocation3], %s164
        %p166 = pneg %p41
        %p167 = pneg %p38
        %p168 = pneg %p62
        %p169 = pneg %p59
        %p170 = pneg %p88
        %p171 = pneg %p85
        %s172 = sand.u32 %s75, 1
        %s173 = scalar_lea.sflag [#allocation5], %s172
        %s174 = sand.u32 %s75, 1
        %s175 = smul.addr %s174, 16
        %s176 = scalar_lea.vmem [#allocation8], %s175
        %vm178 = vcmask 516096
        %vm179 = vsmask.f32 256
        %vm180 = vmand %vm178, %vm179
        %v181 = vld [vmem:[#allocation2] sm:$0x1]
        %v182 = vsel %vm180, 0, %v181
        %183 = vst [vmem:[#allocation2] sm:$0x1] %v182
        %v184 = vld [vmem:[%s152] sm:$0xf]
        %v185 = vld [vmem:[%s152 + $0x4] sm:$0xf]
        %v188 = vunpack.c.l.b16 %v184
        %v189 = vunpack.c.l.b16 %v185
        %v190 = vpack.c.b16 %v189, %v188
        %v192 = vshrl.u32 %v190, 16
        %v194 = vrot.slane %v192, 7
        %v195 = vshll.u32 %v190, 16
        %v197 = vor.u32 %v194, %v195
        %vm199 = vcmask 523264
        %vm200 = vsmask.f32 7938
        %vm201 = vmand %vm199, %vm200
        %v202 = vld [vmem:[#allocation2] sm:$0xff]
        %v203 = vsel %vm201, %v197, %v202
        %204 = vst [vmem:[#allocation2] sm:$0xff] %v203
        %v205 = vld [vmem:[%s152] sm:$0xf]
        %v206 = vld [vmem:[%s152 + $0x4] sm:$0xf]
        %v209 = vunpack.c.l.b16 %v205
        %v210 = vunpack.c.l.b16 %v206
        %v211 = vpack.c.b16 %v210, %v209
        %212 = vrot.lane.b32.xlu0 %v211, 64
        %v213 = vpop.permute.xlu0 %212
        %vm215 = vcmask 1048064
        %216 = vst.msk [vmem:[#allocation2] sm:$0xff] %vm215, %v213
        %vm217 = vcmask 523271
        %vm218 = vsmask.f32 7966
        %vm219 = vmand %vm217, %vm218
        %v220 = vld [vmem:[#allocation2 + $0x8] sm:$0x80]
        %v221 = vsel %vm219, 0, %v220
        %222 = vst [vmem:[#allocation2 + $0x8] sm:$0x80] %v221
        %v223 = vld [vmem:[%s152] sm:$0xf]
        %v224 = vld [vmem:[%s152 + $0x4] sm:$0xf]
        %v227 = vunpack.c.l.b16 %v223
        %v228 = vunpack.c.l.b16 %v224
        %v229 = vpack.c.b16 %v228, %v227
        %v231 = vshrl.u32 %v229, 16
        %v233 = vshll.u32 %v229, 16
        %v235 = vrot.slane %v233, 1
        %v236 = vor.u32 %v231, %v235
        %vm238 = vsmask.f32 7424
        %vm239 = vmand %vm199, %vm238
        %v240 = vld [vmem:[#allocation2 + $0x8] sm:$0xff]
        %v241 = vsel %vm239, %v236, %v240
        %242 = vst [vmem:[#allocation2 + $0x8] sm:$0xff] %v241
        %v243 = vld [vmem:[#allocation2] sm:$0xff]
        %v244 = vld [vmem:[#allocation2 + $0x8] sm:$0xff]
        %v245 = vld [vmem:[#allocation6] sm:$0xf]
        %v246 = vld [vmem:[#allocation6 + $0x4] sm:$0xf]
        %v247 = vld [vmem:[#allocation6 + $0x8] sm:$0xf]
        %v248 = vld [vmem:[#allocation6 + $0xc] sm:$0xf]
        %v249 = vld [vmem:[#allocation6 + $0x10] sm:$0xf]
        %v250 = vld [vmem:[#allocation6 + $0x14] sm:$0xf]
        %v251 = vld [vmem:[#allocation6 + $0x18] sm:$0xf]
        %v252 = vld [vmem:[#allocation6 + $0x1c] sm:$0xf]
        %v253 = vld [vmem:[#allocation6 + $0x20] sm:$0xf]
        %v254 = vld [vmem:[#allocation6 + $0x24] sm:$0xf]
        %v255 = vld [vmem:[#allocation6 + $0x28] sm:$0xf]
        %v256 = vld [vmem:[#allocation6 + $0x2c] sm:$0xf]
        %v257 = vld [vmem:[#allocation6 + $0x30] sm:$0xf]
        %v258 = vld [vmem:[#allocation6 + $0x34] sm:$0xf]
        %v259 = vld [vmem:[#allocation6 + $0x38] sm:$0xf]
        %v260 = vld [vmem:[#allocation6 + $0x3c] sm:$0xf]
        %v261 = vld [vmem:[#allocation6 + $0x40] sm:$0xf]
        %v262 = vld [vmem:[#allocation6 + $0x44] sm:$0xf]
        %v263 = vld [vmem:[#allocation6 + $0x48] sm:$0xf]
        %v264 = vld [vmem:[#allocation6 + $0x4c] sm:$0xf]
        %v265 = vld [vmem:[#allocation6 + $0x50] sm:$0xf]
        %v266 = vld [vmem:[#allocation6 + $0x54] sm:$0xf]
        %v267 = vld [vmem:[#allocation6 + $0x58] sm:$0xf]
        %v268 = vld [vmem:[#allocation6 + $0x5c] sm:$0xf]
        %v293 = vunpack.c.l.b16 %v245
        %v294 = vunpack.c.l.b16 %v246
        %v295 = vunpack.c.l.b16 %v247
        %v296 = vunpack.c.l.b16 %v248
        %v297 = vunpack.c.l.b16 %v249
        %v298 = vunpack.c.l.b16 %v250
        %v299 = vunpack.c.l.b16 %v251
        %v300 = vunpack.c.l.b16 %v252
        %v301 = vunpack.c.l.b16 %v253
        %v302 = vunpack.c.l.b16 %v254
        %v303 = vunpack.c.l.b16 %v255
        %v304 = vunpack.c.l.b16 %v256
        %v305 = vunpack.c.l.b16 %v257
        %v306 = vunpack.c.l.b16 %v258
        %v307 = vunpack.c.l.b16 %v259
        %v308 = vunpack.c.l.b16 %v260
        %v309 = vunpack.c.l.b16 %v261
        %v310 = vunpack.c.l.b16 %v262
        %v311 = vunpack.c.l.b16 %v263
        %v312 = vunpack.c.l.b16 %v264
        %v313 = vunpack.c.l.b16 %v265
        %v314 = vunpack.c.l.b16 %v266
        %v315 = vunpack.c.l.b16 %v267
        %v316 = vunpack.c.l.b16 %v268
        %v317 = vpack.c.b16 %v294, %v293
        %v318 = vpack.c.b16 %v296, %v295
        %v319 = vpack.c.b16 %v298, %v297
        %v320 = vpack.c.b16 %v300, %v299
        %v321 = vpack.c.b16 %v302, %v301
        %v322 = vpack.c.b16 %v304, %v303
        %v323 = vpack.c.b16 %v306, %v305
        %v324 = vpack.c.b16 %v308, %v307
        %v325 = vpack.c.b16 %v310, %v309
        %v326 = vpack.c.b16 %v312, %v311
        %v327 = vpack.c.b16 %v314, %v313
        %v328 = vpack.c.b16 %v316, %v315
        %vm341 = vcmask 523264
        %v343 = vsel %vm341, %v244, 0
        %345 = vmatprep.subr.bf16.mxu0 0
        %346 = vmatpush1.bf16.msra.mxu0 %v317
        %347 = vmatprep.subr.bf16.mxu0 0
        %348 = vmatpush1.bf16.msra.mxu0 %v318
        %349 = vmatprep.subr.bf16.mxu0 0
        %350 = vmatpush1.bf16.msra.mxu0 %v319
        %351 = vmatprep.subr.bf16.mxu0 0
        %352 = vmatpush1.bf16.msra.mxu0 %v320
        %353 = vmatprep.subr.bf16.mxu0 0
        %354 = vmatpush1.bf16.msra.mxu0 %v321
        %355 = vmatprep.subr.bf16.mxu0 0
        %356 = vmatpush1.bf16.msra.mxu0 %v322
        %357 = vmatprep.subr.bf16.mxu0 0
        %358 = vmatpush1.bf16.msra.mxu0 %v323
        %359 = vmatprep.subr.bf16.mxu0 0
        %360 = vmatpush1.bf16.msra.mxu0 %v324
        %361 = vmatprep.subr.bf16.mxu0 0
        %362 = vmatpush1.bf16.msra.mxu0 %v325
        %363 = vmatprep.subr.bf16.mxu0 0
        %364 = vmatpush1.bf16.msra.mxu0 %v326
        %365 = vmatprep.subr.bf16.mxu0 0
        %366 = vmatpush1.bf16.msra.mxu0 %v327
        %367 = vmatprep.subr.bf16.mxu0 0
        %368 = vmatpush1.bf16.msra.mxu0 %v328
        %369 = vmatprep.subr.bf16.mxu0 0
        %370 = vmatpush1.bf16.msra.mxu0 0
        %371 = vmatprep.subr.bf16.mxu0 0
        %372 = vmatpush1.bf16.msra.mxu0 0
        %373 = vmatprep.subr.bf16.mxu0 0
        %374 = vmatpush1.bf16.msra.mxu0 0
        %375 = vmatprep.subr.bf16.mxu0 0
        %376 = vmatpush1.bf16.msra.mxu0 0
        %377 = vmatprep.mubr.bf16.mxu0 %v343
        %378 = vmatmul.mubr.bf16.gmra.mrb[0].mxu0 %v243
        %v379 = vpop.f32.mrb[0].mxu0
        %v380 = vadd.f32 0.0, %v379
        %v381 = vpop.f32.mrb[0].mxu0
        %v382 = vpop.f32.mrb[0].mxu0
        %v383 = vadd.f32 0.0, %v382
        %v384 = vpop.f32.mrb[0].mxu0
        %385 = vdwg.mxu0
        %386 = vst [vmem:[%s176] sm:$0xff] %v380
        %387 = vst [vmem:[%s176 + $0x8] sm:$0xff] %v383
        %s388 = sand.u32 %s75, 1
        %s389 = scalar_lea.sflag [#allocation5], %s388
        %s390 = sand.u32 %s75, 1
        %s391 = smul.addr %s390, 16
        %s392 = scalar_lea.vmem [#allocation8], %s391
        // Predicated region
        $region37: #{tpu_custom_call.1} parent=27 // pred_check
          %p393 = pneg %p85
        $region38: #{tpu_custom_call.1} parent=27 // pred_check_branch
          %395 = sbr.rel (%p393) target = $region40
        $region39: #{tpu_custom_call.1} parent=27 // pred_region
          %s397 = ssub.s32 256, 256
          %398 = vsyncadd %s389, %s397
          %s399 = smul.addr %s20, 2
          %s400 = smul.addr %s399, 128
          %s401 = scalar_lea.hbm %s2, %s400
          %s402 = sshll.u32 %s392, 4
          %s403 = int_to_ptr.vmem [resolvable:$true] %s402
          %408 = dma.vmem_to_hbm [thread:$0]  %s403, 256, %s401, %s389, 128, 128, 8
        $region40: #{tpu_custom_call.1} parent=27 // pred_fallthru
          _
      $region28: #{tpu_custom_call.1} parent=5 // pred_fallthru
        _
      %p409 = scmp.le.s32.totalorder 2, %s15
      // Predicated region
      $region41: #{tpu_custom_call.1} parent=5 // pred_check
        %p410 = pneg %p409
      $region42: #{tpu_custom_call.1} parent=5 // pred_check_branch
        %412 = sbr.rel (%p410) target = $region44
      $region43: #{tpu_custom_call.1} parent=5 // pred_region
        %s413 = ssub.s32 %s15, 2
        // Predicated region
        $region45: #{tpu_custom_call.1} parent=43 // pred_check
          %p414 = pneg %p91
        $region46: #{tpu_custom_call.1} parent=43 // pred_check_branch
          %416 = sbr.rel (%p414) target = $region48
        $region47: #{tpu_custom_call.1} parent=43 // pred_region
          %s417 = sand.u32 %s76, 1
          %s418 = scalar_lea.sflag [#allocation5], %s417
          %s419 = sand.u32 %s76, 1
          %s420 = smul.addr %s419, 16
          %s421 = scalar_lea.vmem [#allocation8], %s420
          %422 = dma.done %s418, 256
        $region48: #{tpu_custom_call.1} parent=43 // pred_fallthru
          _
      $region44: #{tpu_custom_call.1} parent=5 // pred_fallthru
        _
    $region6: #{tpu_custom_call.1} parent=1 // loop_footer
      %s19 = sadd.s32 1, %s15
    $region7: #{tpu_custom_call.1} parent=1 // loop_footer_branch
      %14 = sbr.rel target = $region3
    $region8: #{tpu_custom_call.1} parent=1 // loop_exit
      _
    %423 = vsyncpa [#allocation4], 1
    %s424 = scalar_lea.sflag [#allocation4], 1
    %425 = vsyncpa %s424, 1
    %426 = vsyncpa [#allocation7], 1
    %427 = vsyncpa [#allocation5], 1
    %s428 = scalar_lea.sflag [#allocation5], 1
    %429 = vsyncpa %s428, 1

</llo_original>
